<compile_context>
chip_gen: v7x
topology: tpu7x:2x2x1
jax: 0.10.0
libtpu: 0.0.40
codegen_flags: <defaults>
</compile_context>

<pallas_src>
import jax
import jax.numpy as jnp
from jax.experimental import pallas as pl
from jax.experimental.pallas import tpu as pltpu


def readout_kernel(x_ref, mask_ref, w_cat_ref, b_cat_ref, w_mlp_ref, b_mlp_ref,
                   out_ref):
    # One grid step == Bt batch elements (graphs).
    Bt, L, D = x_ref.shape

    x3 = x_ref[...]                        # (Bt, L, D)
    m3 = mask_ref[...]                     # (Bt, L, 1)

    # One fused MXU matmul: W_cat = [W_emb | W_att]  -> (Bt*L, D+1)
    x2 = x3.reshape(Bt * L, D)
    z = (jnp.dot(x2, w_cat_ref[...], preferred_element_type=jnp.float32)
         + b_cat_ref[...])

    emb = jnp.tanh(z[:, :D]).reshape(Bt, L, D)            # (Bt, L, D)
    att = jax.nn.sigmoid(z[:, D:]).reshape(Bt, L, 1)      # (Bt, L, 1)

    gate = m3 * att                        # (Bt, L, 1)  mask*att combined once
    g = gate * emb                         # (Bt, L, D)
    big_neg = (m3 - 1.0) * 1000000000.0    # (Bt, L, 1)  stays f32

    g_max = jnp.max(g + big_neg, axis=1)   # (Bt, D)  per-graph max over L
    n_nodes = jnp.sum(m3, axis=1)          # (Bt, 1)
    g_sum = jnp.sum(g, axis=1)             # (Bt, D)

    g_read = g_sum / n_nodes + g_max       # (Bt, D)
    # dropout: identity (eval mode)

    out_ref[...] = (jnp.dot(g_read, w_mlp_ref[...],
                            preferred_element_type=jnp.float32)
                    + b_mlp_ref[...])      # (Bt, O_pad) -- lane-dense store


def readout_layer(x, mask, w_att, b_att, w_emb, b_emb, w_mlp, b_mlp,
                  *, batch_tile=8):
    B, L, D = x.shape
    O = w_mlp.shape[1]

    # --- wrapper-side fusions / padding (layout plumbing, not compute) ------
    # Fuse attention weight as last column of the emb weight; fold biases.
    w_cat = jnp.concatenate([w_emb, w_att.reshape(D, 1)], axis=1)        # (D, D+1)
    b_cat = jnp.concatenate([b_emb.reshape(1, D),
                             b_att.reshape(1, 1)], axis=1)               # (1, D+1)

    # Lane-dense output: pad mlp to a multiple of 128 output lanes.
    O_pad = pl.cdiv(O, 128) * 128
    w_mlp_p = jnp.pad(w_mlp, ((0, 0), (0, O_pad - O)))                   # (D, O_pad)
    b_mlp_p = jnp.pad(b_mlp.reshape(1, O), ((0, 0), (0, O_pad - O)))     # (1, O_pad)

    # Batch tile: multiple of 8 so the (Bt, O_pad) output block is (8,128)-aligned.
    Bt = max(8, 8 * (int(batch_tile) // 8))
    B_pad = pl.cdiv(B, Bt) * Bt
    if B_pad != B:
        x = jnp.pad(x, ((0, B_pad - B), (0, 0), (0, 0)))
        # Padded graphs get an all-ones mask so their rows stay finite; they
        # are sliced off below and never observed.
        mask = jnp.pad(mask, ((0, B_pad - B), (0, 0), (0, 0)),
                       constant_values=1.0)

    Dp1 = D + 1
    grid = (B_pad // Bt,)

    out = pl.pallas_call(
        readout_kernel,
        out_shape=jax.ShapeDtypeStruct((B_pad, O_pad), jnp.float32),
        grid_spec=pltpu.PrefetchScalarGridSpec(
            num_scalar_prefetch=0,
            grid=grid,
            in_specs=[
                pl.BlockSpec((Bt, L, D), lambda b: (b, 0, 0)),   # x
                pl.BlockSpec((Bt, L, 1), lambda b: (b, 0, 0)),   # mask
                pl.BlockSpec((D, Dp1), lambda b: (0, 0)),        # w_cat (resident)
                pl.BlockSpec((1, Dp1), lambda b: (0, 0)),        # b_cat
                pl.BlockSpec((D, O_pad), lambda b: (0, 0)),      # w_mlp (padded)
                pl.BlockSpec((1, O_pad), lambda b: (0, 0)),      # b_mlp (padded)
            ],
            out_specs=pl.BlockSpec((Bt, O_pad), lambda b: (b, 0)),
        ),
        compiler_params=pltpu.CompilerParams(
            dimension_semantics=("parallel",),
            vmem_limit_bytes=32 * 1024 * 1024),
    )(x, mask, w_cat, b_cat, w_mlp_p, b_mlp_p)

    return out[:B, :O]


def readout_reference(x, mask, w_att, b_att, w_emb, b_emb, w_mlp, b_mlp):
    """Pure-JAX mirror of the PyTorch forward (for verification)."""
    att = jax.nn.sigmoid(x @ w_att + b_att)        # (B, L, 1)
    emb = jnp.tanh(x @ w_emb + b_emb)              # (B, L, D)
    N = mask.sum(axis=1)                           # (B, 1)
    M = (mask - 1.0) * 1e9                         # (B, L, 1)
    g = mask * att * emb                           # (B, L, D)
    gmax = (g + M).max(axis=1)                     # (B, D)
    g = g.sum(axis=1) / N + gmax                   # (B, D)
    return g @ w_mlp + b_mlp                       # (B, O)


if __name__ == "__main__":
    B, L, D, O = 16, 8, 32, 16   # batch, nodes, input_dim, output_dim

    key = jax.random.PRNGKey(0)
    keys = jax.random.split(key, 9)

    x = jax.random.normal(keys[0], (B, L, D), dtype=jnp.float32)
    # binary node mask with broadcast dim, first `valid[b]` nodes valid per graph
    valid = jax.random.randint(keys[4], (B,), 1, L + 1)
    mask = (jnp.arange(L)[None, :] < valid[:, None]).astype(jnp.float32)
    mask = mask[:, :, None]                                  # (B, L, 1)

    # Deterministic "PyTorch Linear"-style parameters (weights stored transposed:
    # Linear(in, out) weight (out, in) -> here (in, out) so y = x @ W + b).
    def init_linear(k, fan_in, fan_out):
        kw, kb = jax.random.split(k)
        bound = 1.0 / jnp.sqrt(float(fan_in))
        w = jax.random.uniform(kw, (fan_in, fan_out), jnp.float32, -bound, bound)
        b = jax.random.uniform(kb, (1, fan_out), jnp.float32, -bound, bound)
        return w, b

    w_att, b_att = init_linear(keys[1], D, 1)
    w_emb, b_emb = init_linear(keys[2], D, D)
    w_mlp, b_mlp = init_linear(keys[3], D, O)

    out = readout_layer(x, mask, w_att, b_att, w_emb, b_emb, w_mlp, b_mlp,
                        batch_tile=8)
    out = jax.block_until_ready(out)

    ref = readout_reference(x, mask, w_att, b_att, w_emb, b_emb, w_mlp, b_mlp)
    assert out.shape == (B, O)
    assert jnp.allclose(out, ref, atol=1e-4, rtol=1e-4), (
        f"max abs err {jnp.max(jnp.abs(out - ref))}")

    print("KERNEL_OK")
</pallas_src>

<mosaic_0001>
module attributes {stable_mosaic.version = 11 : i64} {
  func.func @readout_kernel(%arg0: i32, %arg1: memref<8x8x32xf32, #tpu.memory_space<vmem>>, %arg2: memref<8x8x1xf32, #tpu.memory_space<vmem>>, %arg3: memref<32x33xf32, #tpu.memory_space<vmem>>, %arg4: memref<1x33xf32, #tpu.memory_space<vmem>>, %arg5: memref<32x128xf32, #tpu.memory_space<vmem>>, %arg6: memref<1x128xf32, #tpu.memory_space<vmem>>, %arg7: memref<8x128xf32, #tpu.memory_space<vmem>>) attributes {dimension_semantics = [#tpu.dimension_semantics<parallel>], iteration_bounds = array<i64: 2>, scalar_prefetch = 0 : i64, scratch_operands = 0 : i64, tpu.core_type = #tpu.core_type<tc>, window_params = [{transform_indices = @transform_0, window_bounds = array<i64: 8, 8, 32>}, {transform_indices = @transform_1, window_bounds = array<i64: 8, 8, 1>}, {pipeline_mode = #tpu.pipeline_mode<synchronous>, transform_indices = @transform_2, window_bounds = array<i64: 32, 33>}, {pipeline_mode = #tpu.pipeline_mode<synchronous>, transform_indices = @transform_3, window_bounds = array<i64: 1, 33>}, {pipeline_mode = #tpu.pipeline_mode<synchronous>, transform_indices = @transform_4, window_bounds = array<i64: 32, 128>}, {pipeline_mode = #tpu.pipeline_mode<synchronous>, transform_indices = @transform_5, window_bounds = array<i64: 1, 128>}, {transform_indices = @transform_6, window_bounds = array<i64: 8, 128>}]} {
    %c0 = arith.constant 0 : index
    %c0_0 = arith.constant 0 : index
    %c0_1 = arith.constant 0 : index
    %0 = vector.load %arg1[%c0, %c0_0, %c0_1] : memref<8x8x32xf32, #tpu.memory_space<vmem>>, vector<8x8x32xf32>
    %c0_2 = arith.constant 0 : index
    %c0_3 = arith.constant 0 : index
    %c0_4 = arith.constant 0 : index
    %1 = vector.load %arg2[%c0_2, %c0_3, %c0_4] : memref<8x8x1xf32, #tpu.memory_space<vmem>>, vector<8x8x1xf32>
    %2 = vector.shape_cast %0 : vector<8x8x32xf32> to vector<64x32xf32>
    %c0_5 = arith.constant 0 : index
    %c0_6 = arith.constant 0 : index
    %3 = vector.load %arg3[%c0_5, %c0_6] : memref<32x33xf32, #tpu.memory_space<vmem>>, vector<32x33xf32>
    %cst = arith.constant dense<0.000000e+00> : vector<64x33xf32>
    %4 = tpu.matmul %2, %3, %cst {dimension_numbers = #tpu.dot_dimension_numbers<[1], [0], [0], [1], [0, 0, 1, 1], [], []>} : vector<64x32xf32>, vector<32x33xf32>, vector<64x33xf32> -> vector<64x33xf32>
    %c0_7 = arith.constant 0 : index
    %c0_8 = arith.constant 0 : index
    %5 = vector.load %arg4[%c0_7, %c0_8] : memref<1x33xf32, #tpu.memory_space<vmem>>, vector<1x33xf32>
    %6 = vector.broadcast %5 : vector<1x33xf32> to vector<64x33xf32>
    %7 = arith.addf %4, %6 : vector<64x33xf32>
    %8 = vector.extract_strided_slice %7 {offsets = [0, 0], sizes = [64, 32], strides = [1, 1]} : vector<64x33xf32> to vector<64x32xf32>
    %9 = math.tanh %8 : vector<64x32xf32>
    %10 = vector.shape_cast %9 : vector<64x32xf32> to vector<8x8x32xf32>
    %11 = vector.extract_strided_slice %7 {offsets = [0, 32], sizes = [64, 1], strides = [1, 1]} : vector<64x33xf32> to vector<64x1xf32>
    %12 = arith.negf %11 : vector<64x1xf32>
    %13 = math.exp %12 : vector<64x1xf32>
    %cst_9 = arith.constant 1.000000e+00 : f32
    %14 = vector.broadcast %cst_9 : f32 to vector<64x1xf32>
    %15 = arith.addf %14, %13 : vector<64x1xf32>
    %16 = arith.divf %14, %15 : vector<64x1xf32>
    %17 = vector.shape_cast %16 : vector<64x1xf32> to vector<8x8x1xf32>
    %18 = arith.mulf %1, %17 : vector<8x8x1xf32>
    %19 = vector.broadcast %18 : vector<8x8x1xf32> to vector<8x8x32xf32>
    %20 = arith.mulf %19, %10 : vector<8x8x32xf32>
    %cst_10 = arith.constant 1.000000e+00 : f32
    %21 = vector.broadcast %cst_10 : f32 to vector<8x8x1xf32>
    %22 = arith.subf %1, %21 : vector<8x8x1xf32>
    %cst_11 = arith.constant 1.000000e+09 : f32
    %23 = vector.broadcast %cst_11 : f32 to vector<8x8x1xf32>
    %24 = arith.mulf %22, %23 : vector<8x8x1xf32>
    %25 = vector.broadcast %24 : vector<8x8x1xf32> to vector<8x8x32xf32>
    %26 = arith.addf %20, %25 : vector<8x8x32xf32>
    %cst_12 = arith.constant dense<0xFF800000> : vector<8x32xf32>
    %27 = vector.multi_reduction <maximumf>, %26, %cst_12 [1] : vector<8x8x32xf32> to vector<8x32xf32>
    %cst_13 = arith.constant dense<0.000000e+00> : vector<8x1xf32>
    %28 = vector.multi_reduction <add>, %1, %cst_13 [1] : vector<8x8x1xf32> to vector<8x1xf32>
    %cst_14 = arith.constant dense<0.000000e+00> : vector<8x32xf32>
    %29 = vector.multi_reduction <add>, %20, %cst_14 [1] : vector<8x8x32xf32> to vector<8x32xf32>
    %30 = vector.broadcast %28 : vector<8x1xf32> to vector<8x32xf32>
    %31 = arith.divf %29, %30 : vector<8x32xf32>
    %32 = arith.addf %31, %27 : vector<8x32xf32>
    %c0_15 = arith.constant 0 : index
    %c0_16 = arith.constant 0 : index
    %33 = vector.load %arg5[%c0_15, %c0_16] : memref<32x128xf32, #tpu.memory_space<vmem>>, vector<32x128xf32>
    %cst_17 = arith.constant dense<0.000000e+00> : vector<8x128xf32>
    %34 = tpu.matmul %32, %33, %cst_17 {dimension_numbers = #tpu.dot_dimension_numbers<[1], [0], [0], [1], [0, 0, 1, 1], [], []>} : vector<8x32xf32>, vector<32x128xf32>, vector<8x128xf32> -> vector<8x128xf32>
    %c0_18 = arith.constant 0 : index
    %c0_19 = arith.constant 0 : index
    %35 = vector.load %arg6[%c0_18, %c0_19] : memref<1x128xf32, #tpu.memory_space<vmem>>, vector<1x128xf32>
    %36 = vector.broadcast %35 : vector<1x128xf32> to vector<8x128xf32>
    %37 = arith.addf %34, %36 : vector<8x128xf32>
    %c0_20 = arith.constant 0 : index
    %c0_21 = arith.constant 0 : index
    %38 = vector.load %arg7[%c0_20, %c0_21] : memref<8x128xf32, #tpu.memory_space<vmem>>, vector<8x128xf32>
    tpu.vector_store %arg7[%c0_20, %c0_21], %37 {strides = array<i32>} : memref<8x128xf32, #tpu.memory_space<vmem>>, vector<8x128xf32>,
    return
  }
  func.func @transform_0(%arg0: i32) -> (i32, i32, i32) {
    %c0_i32 = arith.constant 0 : i32
    %c0_i32_0 = arith.constant 0 : i32
    %c0_i32_1 = arith.constant 0 : i32
    return %arg0, %c0_i32, %c0_i32_0 : i32, i32, i32
  }
  func.func @transform_1(%arg0: i32) -> (i32, i32, i32) {
    %c0_i32 = arith.constant 0 : i32
    %c0_i32_0 = arith.constant 0 : i32
    %c0_i32_1 = arith.constant 0 : i32
    return %arg0, %c0_i32, %c0_i32_0 : i32, i32, i32
  }
  func.func @transform_2(%arg0: i32) -> (i32, i32) {
    %c0_i32 = arith.constant 0 : i32
    %c0_i32_0 = arith.constant 0 : i32
    %c0_i32_1 = arith.constant 0 : i32
    return %c0_i32, %c0_i32_0 : i32, i32
  }
  func.func @transform_3(%arg0: i32) -> (i32, i32) {
    %c0_i32 = arith.constant 0 : i32
    %c0_i32_0 = arith.constant 0 : i32
    %c0_i32_1 = arith.constant 0 : i32
    return %c0_i32, %c0_i32_0 : i32, i32
  }
  func.func @transform_4(%arg0: i32) -> (i32, i32) {
    %c0_i32 = arith.constant 0 : i32
    %c0_i32_0 = arith.constant 0 : i32
    %c0_i32_1 = arith.constant 0 : i32
    return %c0_i32, %c0_i32_0 : i32, i32
  }
  func.func @transform_5(%arg0: i32) -> (i32, i32) {
    %c0_i32 = arith.constant 0 : i32
    %c0_i32_0 = arith.constant 0 : i32
    %c0_i32_1 = arith.constant 0 : i32
    return %c0_i32, %c0_i32_0 : i32, i32
  }
  func.func @transform_6(%arg0: i32) -> (i32, i32) {
    %c0_i32 = arith.constant 0 : i32
    %c0_i32_0 = arith.constant 0 : i32
    return %arg0, %c0_i32 : i32, i32
  }
}

</mosaic_0001>

<llo_original>
// kernel: tpu_custom_call.1
$region0: #{tpu_custom_call.1}
  #allocation0 [shape = 'u32[]', space=smem, size = 0x4, offset = 0x4, fixed_abs, tag = 'smem constant byte address 0x4 - core index']
  #allocation1 [shape = 'u32[144,128]{1,0:T(1,128)}', space=vmem, size = 0x12000, scoped, tag = 'internal scratch']
  %s0 = inlined_call_operand.vmem [shape: f32[16,8,32], index: 0, kind: input, shape index: {}]
  %s1 = inlined_call_operand.vmem [shape: f32[16,8,1], index: 1, kind: input, shape index: {}]
  %s2 = inlined_call_operand.hbm [shape: f32[32,33], index: 2, kind: input, shape index: {}]
  %s3 = inlined_call_operand.vmem [shape: f32[1,33], index: 3, kind: input, shape index: {}]
  %s4 = inlined_call_operand.hbm [shape: f32[32,128], index: 4, kind: input, shape index: {}]
  %s5 = inlined_call_operand.vmem [shape: f32[1,128], index: 5, kind: input, shape index: {}]
  %s6 = inlined_call_operand.hbm [shape: f32[16,128], index: 6, kind: output, shape index: {}]
  %s7 = sld [smem:[#allocation0]]
  $region65: #{tpu_custom_call.1} parent=0
    _
  %s9 = ssub.s32 1, %s7
  %s10 = scalar_select 0, %s9, %s7
  $region1: #{tpu_custom_call.1} parent=0
    #allocation2 [shape = 'u8[16384]{0}', space=vmem, size = 0x4000, scoped, tag = 'input window, operand 2, single buffered']
    #allocation3 [shape = 's32[2]{0}', space=sflag, size = 0x8, scoped, tag = 'scoped memory for tpu_custom_call.1']
    #allocation4 [shape = 's32[2]{0}', space=sflag, size = 0x8, scoped, tag = 'scoped memory for tpu_custom_call.1']
    #allocation5 [shape = 'u8[16384]{0}', space=vmem, size = 0x4000, scoped, tag = 'input window, operand 4, single buffered']
    #allocation6 [shape = 's32[1]{0}', space=sflag, size = 0x4, scoped, tag = 'scoped memory for tpu_custom_call.1']
    #allocation7 [shape = 'u8[8192]{0}', space=vmem, size = 0x2000, scoped, tag = 'output window, operand 0']
    %11 = vsyncpa [#allocation3], 0
    %12 = vsyncpa [#allocation6], 0
    %13 = vsyncpa [#allocation4], 0
    %s14 = scalar_lea.sflag [#allocation4], 1
    %15 = vsyncpa %s14, 0
    loop: start=0, step=1, limit=4
    $region2: #{tpu_custom_call.1} parent=1 // loop_pre_header
      _
    $region3: #{tpu_custom_call.1} parent=1 // loop_header
      %s17 = sphi 0, %s21
      %p18 = scmp.ge.s32.totalorder %s17, 4
      %s27 = sphi 0, %s29
      %s30 = sphi 0, %s27
      %s31 = sphi 0, %s30
      %s47 = sphi 0, %s31
      %s53 = sphi 0, %s55
      %s56 = sphi 0, %s53
      %s57 = sphi 0, %s56
      %s73 = sphi 0, %s57
      %s77 = sphi 0, %s77
      %s79 = sphi 0, %s77
      %s80 = sphi 0, %s79
      %s94 = sphi 0, %s80
      %s98 = sphi 0, %s98
      %s100 = sphi 0, %s98
      %s101 = sphi 0, %s100
      %s115 = sphi 0, %s101
      %s119 = sphi 0, %s119
      %s121 = sphi 0, %s119
      %s122 = sphi 0, %s121
      %s136 = sphi 0, %s122
      %s140 = sphi 0, %s140
      %s142 = sphi 0, %s140
      %s143 = sphi 0, %s142
      %s157 = sphi 0, %s143
      %s163 = sphi 0, %s165
      %s166 = sphi 0, %s163
      %s167 = sphi 0, %s166
      %s183 = sphi 0, %s167
    $region4: #{tpu_custom_call.1} parent=1 // loop_header_branch
      %20 = sbr.rel (%p18) target = $region8
    $region5: #{tpu_custom_call.1} parent=1 // loop_body
      %s22 = ssub.s32 %s17, 1
      %s23 = ssub.s32 %s17, 2
      %s24 = sadd.s32 %s17, 1
      %s25 = ssub.s32 %s17, %s24
      %p26 = scmp.eq.s32.totalorder %s25, 0
      %s28 = sadd.s32 %s27, 1
      %s29 = scalar_select %p26, %s27, %s28
      %p32 = pneg %p26
      %p33 = scmp.eq.s32.totalorder %s17, 1
      %p34 = por %p32, %p33
      %p35 = scmp.ne.s32.totalorder %s27, %s30
      %p36 = scmp.eq.s32.totalorder %s17, 0
      %p37 = por %p35, %p36
      %p38 = scmp.ne.s32.totalorder %s27, %s30
      %p39 = scmp.eq.s32.totalorder %s22, 1
      %p40 = por %p38, %p39
      %p41 = scmp.ne.s32.totalorder %s30, %s31
      %p42 = scmp.eq.s32.totalorder %s22, 0
      %p43 = por %p41, %p42
      %p44 = scmp.ne.s32.totalorder %s30, %s31
      %p45 = scmp.eq.s32.totalorder %s23, 1
      %p46 = por %p44, %p45
      %p48 = scmp.ne.s32.totalorder %s31, %s47
      %p49 = scmp.eq.s32.totalorder %s23, 0
      %p50 = por %p48, %p49
      %s51 = ssub.s32 %s17, %s24
      %p52 = scmp.eq.s32.totalorder %s51, 0
      %s54 = sadd.s32 %s53, 1
      %s55 = scalar_select %p52, %s53, %s54
      %p58 = pneg %p52
      %p59 = scmp.eq.s32.totalorder %s17, 1
      %p60 = por %p58, %p59
      %p61 = scmp.ne.s32.totalorder %s53, %s56
      %p62 = scmp.eq.s32.totalorder %s17, 0
      %p63 = por %p61, %p62
      %p64 = scmp.ne.s32.totalorder %s53, %s56
      %p65 = scmp.eq.s32.totalorder %s22, 1
      %p66 = por %p64, %p65
      %p67 = scmp.ne.s32.totalorder %s56, %s57
      %p68 = scmp.eq.s32.totalorder %s22, 0
      %p69 = por %p67, %p68
      %p70 = scmp.ne.s32.totalorder %s56, %s57
      %p71 = scmp.eq.s32.totalorder %s23, 1
      %p72 = por %p70, %p71
      %p74 = scmp.ne.s32.totalorder %s57, %s73
      %p75 = scmp.eq.s32.totalorder %s23, 0
      %p76 = por %p74, %p75
      %s78 = sadd.s32 %s77, 1
      %p81 = scmp.eq.s32.totalorder %s17, 1
      %p82 = scmp.ne.s32.totalorder %s77, %s79
      %p83 = scmp.eq.s32.totalorder %s17, 0
      %p84 = por %p82, %p83
      %p85 = scmp.ne.s32.totalorder %s77, %s79
      %p86 = scmp.eq.s32.totalorder %s22, 1
      %p87 = por %p85, %p86
      %p88 = scmp.ne.s32.totalorder %s79, %s80
      %p89 = scmp.eq.s32.totalorder %s22, 0
      %p90 = por %p88, %p89
      %p91 = scmp.ne.s32.totalorder %s79, %s80
      %p92 = scmp.eq.s32.totalorder %s23, 1
      %p93 = por %p91, %p92
      %p95 = scmp.ne.s32.totalorder %s80, %s94
      %p96 = scmp.eq.s32.totalorder %s23, 0
      %p97 = por %p95, %p96
      %s99 = sadd.s32 %s98, 1
      %p102 = scmp.eq.s32.totalorder %s17, 1
      %p103 = scmp.ne.s32.totalorder %s98, %s100
      %p104 = scmp.eq.s32.totalorder %s17, 0
      %p105 = por %p103, %p104
      %p106 = scmp.ne.s32.totalorder %s98, %s100
      %p107 = scmp.eq.s32.totalorder %s22, 1
      %p108 = por %p106, %p107
      %p109 = scmp.ne.s32.totalorder %s100, %s101
      %p110 = scmp.eq.s32.totalorder %s22, 0
      %p111 = por %p109, %p110
      %p112 = scmp.ne.s32.totalorder %s100, %s101
      %p113 = scmp.eq.s32.totalorder %s23, 1
      %p114 = por %p112, %p113
      %p116 = scmp.ne.s32.totalorder %s101, %s115
      %p117 = scmp.eq.s32.totalorder %s23, 0
      %p118 = por %p116, %p117
      %s120 = sadd.s32 %s119, 1
      %p123 = scmp.eq.s32.totalorder %s17, 1
      %p124 = scmp.ne.s32.totalorder %s119, %s121
      %p125 = scmp.eq.s32.totalorder %s17, 0
      %p126 = por %p124, %p125
      %p127 = scmp.ne.s32.totalorder %s119, %s121
      %p128 = scmp.eq.s32.totalorder %s22, 1
      %p129 = por %p127, %p128
      %p130 = scmp.ne.s32.totalorder %s121, %s122
      %p131 = scmp.eq.s32.totalorder %s22, 0
      %p132 = por %p130, %p131
      %p133 = scmp.ne.s32.totalorder %s121, %s122
      %p134 = scmp.eq.s32.totalorder %s23, 1
      %p135 = por %p133, %p134
      %p137 = scmp.ne.s32.totalorder %s122, %s136
      %p138 = scmp.eq.s32.totalorder %s23, 0
      %p139 = por %p137, %p138
      %s141 = sadd.s32 %s140, 1
      %p144 = scmp.eq.s32.totalorder %s17, 1
      %p145 = scmp.ne.s32.totalorder %s140, %s142
      %p146 = scmp.eq.s32.totalorder %s17, 0
      %p147 = por %p145, %p146
      %p148 = scmp.ne.s32.totalorder %s140, %s142
      %p149 = scmp.eq.s32.totalorder %s22, 1
      %p150 = por %p148, %p149
      %p151 = scmp.ne.s32.totalorder %s142, %s143
      %p152 = scmp.eq.s32.totalorder %s22, 0
      %p153 = por %p151, %p152
      %p154 = scmp.ne.s32.totalorder %s142, %s143
      %p155 = scmp.eq.s32.totalorder %s23, 1
      %p156 = por %p154, %p155
      %p158 = scmp.ne.s32.totalorder %s143, %s157
      %p159 = scmp.eq.s32.totalorder %s23, 0
      %p160 = por %p158, %p159
      %s161 = ssub.s32 %s17, %s24
      %p162 = scmp.eq.s32.totalorder %s161, 0
      %s164 = sadd.s32 %s163, 1
      %s165 = scalar_select %p162, %s163, %s164
      %p168 = pneg %p162
      %p169 = scmp.eq.s32.totalorder %s17, 1
      %p170 = por %p168, %p169
      %p171 = scmp.ne.s32.totalorder %s163, %s166
      %p172 = scmp.eq.s32.totalorder %s17, 0
      %p173 = por %p171, %p172
      %p174 = scmp.ne.s32.totalorder %s163, %s166
      %p175 = scmp.eq.s32.totalorder %s22, 1
      %p176 = por %p174, %p175
      %p177 = scmp.ne.s32.totalorder %s166, %s167
      %p178 = scmp.eq.s32.totalorder %s22, 0
      %p179 = por %p177, %p178
      %p180 = scmp.ne.s32.totalorder %s166, %s167
      %p181 = scmp.eq.s32.totalorder %s23, 1
      %p182 = por %p180, %p181
      %p184 = scmp.ne.s32.totalorder %s167, %s183
      %p185 = scmp.eq.s32.totalorder %s23, 0
      %p186 = por %p184, %p185
      %p187 = scmp.le.s32.totalorder 1, %s17
      %p188 = scmp.lt.s32.totalorder %s17, 3
      %p189 = pnand %p187, %p188
      %p190 = pneg %p189
      // Predicated region
      $region9: #{tpu_custom_call.1} parent=5 // pred_check
        _
      $region10: #{tpu_custom_call.1} parent=5 // pred_check_branch
        %192 = sbr.rel (%p189) target = $region12
      $region11: #{tpu_custom_call.1} parent=5 // pred_region
        %s193 = ssub.s32 %s17, 1
        // Predicated region
        $region13: #{tpu_custom_call.1} parent=11 // pred_check
          %p194 = pneg %p90
        $region14: #{tpu_custom_call.1} parent=11 // pred_check_branch
          %196 = sbr.rel (%p194) target = $region16
        $region15: #{tpu_custom_call.1} parent=11 // pred_region
          %s198 = ssub.s32 512, 512
          %199 = vsyncadd [#allocation3], %s198
          %s200 = sshll.u32 [#allocation2], 4
          %s201 = int_to_ptr.vmem [resolvable:$true] %s200
          %206 = dma.hbm_to_vmem [thread:$0]  %s2, 512, %s201, [#allocation3], 128, 128, 8
        $region16: #{tpu_custom_call.1} parent=11 // pred_fallthru
          _
        // Predicated region
        $region17: #{tpu_custom_call.1} parent=11 // pred_check
          %p207 = pneg %p111
        $region18: #{tpu_custom_call.1} parent=11 // pred_check_branch
          %209 = sbr.rel (%p207) target = $region20
        $region19: #{tpu_custom_call.1} parent=11 // pred_region
          _
        $region20: #{tpu_custom_call.1} parent=11 // pred_fallthru
          _
        // Predicated region
        $region21: #{tpu_custom_call.1} parent=11 // pred_check
          %p210 = pneg %p132
        $region22: #{tpu_custom_call.1} parent=11 // pred_check_branch
          %212 = sbr.rel (%p210) target = $region24
        $region23: #{tpu_custom_call.1} parent=11 // pred_region
          %s214 = ssub.s32 512, 512
          %215 = vsyncadd [#allocation6], %s214
          %s216 = sshll.u32 [#allocation5], 4
          %s217 = int_to_ptr.vmem [resolvable:$true] %s216
          %222 = dma.hbm_to_vmem [thread:$0]  %s4, 512, %s217, [#allocation6], 128, 128, 8
        $region24: #{tpu_custom_call.1} parent=11 // pred_fallthru
          _
        // Predicated region
        $region25: #{tpu_custom_call.1} parent=11 // pred_check
          %p223 = pneg %p153
        $region26: #{tpu_custom_call.1} parent=11 // pred_check_branch
          %225 = sbr.rel (%p223) target = $region28
        $region27: #{tpu_custom_call.1} parent=11 // pred_region
          _
        $region28: #{tpu_custom_call.1} parent=11 // pred_fallthru
          _
      $region12: #{tpu_custom_call.1} parent=5 // pred_fallthru
        _
      %p226 = scmp.lt.s32.totalorder %s17, 2
      // Predicated region
      $region29: #{tpu_custom_call.1} parent=5 // pred_check
        %p227 = pneg %p226
      $region30: #{tpu_custom_call.1} parent=5 // pred_check_branch
        %229 = sbr.rel (%p227) target = $region32
      $region31: #{tpu_custom_call.1} parent=5 // pred_region
        // Predicated region
        $region33: #{tpu_custom_call.1} parent=31 // pred_check
          %p230 = pneg %p37
        $region34: #{tpu_custom_call.1} parent=31 // pred_check_branch
          %232 = sbr.rel (%p230) target = $region36
        $region35: #{tpu_custom_call.1} parent=31 // pred_region
          %s233 = smul.u32 8, %s17
          %p234 = scmp.lt.s32.totalorder %s233, 15
          %s235 = scalar_select %p234, %s233, 15
          %s236 = smul.addr %s235, 8
          %s237 = scalar_lea.vmem %s0, %s236
          %s238 = smul.u32 8, %s17
        $region36: #{tpu_custom_call.1} parent=31 // pred_fallthru
          _
        // Predicated region
        $region37: #{tpu_custom_call.1} parent=31 // pred_check
          %p239 = pneg %p63
        $region38: #{tpu_custom_call.1} parent=31 // pred_check_branch
          %241 = sbr.rel (%p239) target = $region40
        $region39: #{tpu_custom_call.1} parent=31 // pred_region
          %s242 = smul.u32 8, %s17
          %p243 = scmp.lt.s32.totalorder %s242, 15
          %s244 = scalar_select %p243, %s242, 15
          %s245 = smul.addr %s244, 8
          %s246 = scalar_lea.vmem %s1, %s245
          %s247 = smul.u32 8, %s17
        $region40: #{tpu_custom_call.1} parent=31 // pred_fallthru
          _
      $region32: #{tpu_custom_call.1} parent=5 // pred_fallthru
        _
      %p248 = scmp.le.s32.totalorder 1, %s17
      %p249 = scmp.lt.s32.totalorder %s17, 3
      %p250 = pnand %p248, %p249
      %p251 = pneg %p250
      // Predicated region
      $region41: #{tpu_custom_call.1} parent=5 // pred_check
        _
      $region42: #{tpu_custom_call.1} parent=5 // pred_check_branch
        %253 = sbr.rel (%p250) target = $region44
      $region43: #{tpu_custom_call.1} parent=5 // pred_region
        %s254 = ssub.s32 %s17, 1
        // Predicated region
        $region45: #{tpu_custom_call.1} parent=43 // pred_check
          %p255 = pneg %p90
        $region46: #{tpu_custom_call.1} parent=43 // pred_check_branch
          %257 = sbr.rel (%p255) target = $region48
        $region47: #{tpu_custom_call.1} parent=43 // pred_region
          %258 = dma.done [#allocation3], 512
        $region48: #{tpu_custom_call.1} parent=43 // pred_fallthru
          _
        // Predicated region
        $region49: #{tpu_custom_call.1} parent=43 // pred_check
          %p259 = pneg %p132
        $region50: #{tpu_custom_call.1} parent=43 // pred_check_branch
          %261 = sbr.rel (%p259) target = $region52
        $region51: #{tpu_custom_call.1} parent=43 // pred_region
          %262 = dma.done [#allocation6], 512
        $region52: #{tpu_custom_call.1} parent=43 // pred_fallthru
          _
        %s263 = smul.u32 8, %s22
        %p264 = scmp.lt.s32.totalorder %s263, 15
        %s265 = scalar_select %p264, %s263, 15
        %s266 = smul.addr %s265, 8
        %s267 = scalar_lea.vmem %s0, %s266
        %p268 = pneg %p43
        %p269 = pneg %p40
        %s270 = smul.u32 8, %s22
        %p271 = scmp.lt.s32.totalorder %s270, 15
        %s272 = scalar_select %p271, %s270, 15
        %s273 = smul.addr %s272, 8
        %s274 = scalar_lea.vmem %s1, %s273
        %p275 = pneg %p69
        %p276 = pneg %p66
        %p277 = pneg %p90
        %p278 = pneg %p87
        %p279 = pneg %p111
        %p280 = pneg %p108
        %p281 = pneg %p132
        %p282 = pneg %p129
        %p283 = pneg %p153
        %p284 = pneg %p150
        %p285 = pneg %p179
        %p286 = pneg %p176
        %s287 = sand.u32 %s166, 1
        %s288 = scalar_lea.sflag [#allocation4], %s287
        %s289 = sand.u32 %s166, 1
        %s290 = smul.addr %s289, 8
        %s291 = scalar_lea.vmem [#allocation7], %s290
        %s292 = smul.u32 8, %s22
        %p293 = scmp.lt.s32.totalorder %s292, 15
        %s294 = scalar_select %p293, %s292, 15
        %s295 = smul.addr %s294, 8
        %s296 = scalar_lea.vmem %s0, %s295
        %s297 = smul.u32 8, %s22
        %s298 = smul.u32 8, %s22
        %p299 = scmp.lt.s32.totalorder %s298, 15
        %s300 = scalar_select %p299, %s298, 15
        %s301 = smul.addr %s300, 8
        %s302 = scalar_lea.vmem %s1, %s301
        %s303 = smul.u32 8, %s22
        %v304 = vld [vmem:[%s296] sm:$0xff]
        %v305 = vld [vmem:[%s296 + $0x8] sm:$0xff]
        %v306 = vld [vmem:[%s296 + $0x10] sm:$0xff]
        %v307 = vld [vmem:[%s296 + $0x18] sm:$0xff]
        %v308 = vld [vmem:[%s296 + $0x20] sm:$0xff]
        %v309 = vld [vmem:[%s296 + $0x28] sm:$0xff]
        %v310 = vld [vmem:[%s296 + $0x30] sm:$0xff]
        %v311 = vld [vmem:[%s296 + $0x38] sm:$0xff]
        %v312 = vld [vmem:[%s302] sm:$0xff]
        %v313 = vld [vmem:[%s302 + $0x8] sm:$0xff]
        %v314 = vld [vmem:[%s302 + $0x10] sm:$0xff]
        %v315 = vld [vmem:[%s302 + $0x18] sm:$0xff]
        %v316 = vld [vmem:[%s302 + $0x20] sm:$0xff]
        %v317 = vld [vmem:[%s302 + $0x28] sm:$0xff]
        %v318 = vld [vmem:[%s302 + $0x30] sm:$0xff]
        %v319 = vld [vmem:[%s302 + $0x38] sm:$0xff]
        %v320 = vld [vmem:[#allocation2] sm:$0xff]
        %v321 = vld [vmem:[#allocation2 + $0x8] sm:$0xff]
        %v322 = vld [vmem:[#allocation2 + $0x10] sm:$0xff]
        %v323 = vld [vmem:[#allocation2 + $0x18] sm:$0xff]
        %v324 = vld [vmem:[%s3] sm:$0x1]
        %v326 = vlaneseq
        %v327 = vshrl.u32 %v326, 7
        %v328 = vsub.s32 0, %v327
        %v329 = vrot.slane %v324, %v328
        %vm331 = vcmask 261120
        %v333 = vsel %vm331, %v304, 0
        %v336 = vsel %vm331, %v305, 0
        %v339 = vsel %vm331, %v306, 0
        %v342 = vsel %vm331, %v307, 0
        %v345 = vsel %vm331, %v308, 0
        %v348 = vsel %vm331, %v309, 0
        %v351 = vsel %vm331, %v310, 0
        %v354 = vsel %vm331, %v311, 0
        %356 = vmatprep.subr.mxu0 0.0
        %357 = vmatpush1.msra.mxu0 %v320
        %358 = vmatprep.subr.mxu0 0.0
        %359 = vmatpush1.msra.mxu0 %v321
        %360 = vmatprep.subr.mxu0 0.0
        %361 = vmatpush1.msra.mxu0 %v322
        %362 = vmatprep.subr.mxu0 0.0
        %363 = vmatpush1.msra.mxu0 %v323
        %364 = vmatprep.subr.mxu0 0.0
        %365 = vmatpush1.msra.mxu0 0.0
        %366 = vmatprep.subr.mxu0 0.0
        %367 = vmatpush1.msra.mxu0 0.0
        %368 = vmatprep.subr.mxu0 0.0
        %369 = vmatpush1.msra.mxu0 0.0
        %370 = vmatprep.subr.mxu0 0.0
        %371 = vmatpush1.msra.mxu0 0.0
        %372 = vmatprep.subr.mxu0 0.0
        %373 = vmatpush1.msra.mxu0 0.0
        %374 = vmatprep.subr.mxu0 0.0
        %375 = vmatpush1.msra.mxu0 0.0
        %376 = vmatprep.subr.mxu0 0.0
        %377 = vmatpush1.msra.mxu0 0.0
        %378 = vmatprep.subr.mxu0 0.0
        %379 = vmatpush1.msra.mxu0 0.0
        %380 = vmatprep.subr.mxu0 0.0
        %381 = vmatpush1.msra.mxu0 0.0
        %382 = vmatprep.subr.mxu0 0.0
        %383 = vmatpush1.msra.mxu0 0.0
        %384 = vmatprep.subr.mxu0 0.0
        %385 = vmatpush1.msra.mxu0 0.0
        %386 = vmatprep.subr.mxu0 0.0
        %387 = vmatpush1.msra.mxu0 0.0
        %388 = vmatprep.subr.mxu0 0.0
        %389 = vmatpush1.msra.mxu0 0.0
        %390 = vmatprep.subr.mxu0 0.0
        %391 = vmatpush1.msra.mxu0 0.0
        %392 = vmatprep.subr.mxu0 0.0
        %393 = vmatpush1.msra.mxu0 0.0
        %394 = vmatprep.subr.mxu0 0.0
        %395 = vmatpush1.msra.mxu0 0.0
        %396 = vmatprep.subr.mxu0 0.0
        %397 = vmatpush1.msra.mxu0 0.0
        %398 = vmatprep.subr.mxu0 0.0
        %399 = vmatpush1.msra.mxu0 0.0
        %400 = vmatprep.subr.mxu0 0.0
        %401 = vmatpush1.msra.mxu0 0.0
        %402 = vmatprep.subr.mxu0 0.0
        %403 = vmatpush1.msra.mxu0 0.0
        %404 = vmatprep.subr.mxu0 0.0
        %405 = vmatpush1.msra.mxu0 0.0
        %406 = vmatprep.subr.mxu0 0.0
        %407 = vmatpush1.msra.mxu0 0.0
        %408 = vmatprep.subr.mxu0 0.0
        %409 = vmatpush1.msra.mxu0 0.0
        %410 = vmatprep.subr.mxu0 0.0
        %411 = vmatpush1.msra.mxu0 0.0
        %412 = vmatprep.subr.mxu0 0.0
        %413 = vmatpush1.msra.mxu0 0.0
        %414 = vmatprep.subr.mxu0 0.0
        %415 = vmatpush1.msra.mxu0 0.0
        %416 = vmatprep.subr.mxu0 0.0
        %417 = vmatpush1.msra.mxu0 0.0
        %418 = vmatprep.subr.mxu0 0.0
        %419 = vmatpush1.msra.mxu0 0.0
        %420 = vmatprep.mubr.f32.mxu0 0.0
        %421 = vmatmul.mubr.f32.gmra.mrb[0].mxu0 %v333
        %v422 = vpop.f32.mrb[0].mxu0
        %v423 = vadd.f32 %v329, %v422
        %v424 = vpop.f32.mrb[0].mxu0
        %425 = vmatprep.mubr.f32.mxu0 0.0
        %426 = vmatmul.mubr.f32.gmra.mrb[0].mxu0 %v336
        %v427 = vpop.f32.mrb[0].mxu0
        %v428 = vadd.f32 %v329, %v427
        %v429 = vpop.f32.mrb[0].mxu0
        %430 = vmatprep.mubr.f32.mxu0 0.0
        %431 = vmatmul.mubr.f32.gmra.mrb[0].mxu0 %v339
        %v432 = vpop.f32.mrb[0].mxu0
        %v433 = vadd.f32 %v329, %v432
        %v434 = vpop.f32.mrb[0].mxu0
        %435 = vmatprep.mubr.f32.mxu0 0.0
        %436 = vmatmul.mubr.f32.gmra.mrb[0].mxu0 %v342
        %v437 = vpop.f32.mrb[0].mxu0
        %v438 = vadd.f32 %v329, %v437
        %v439 = vpop.f32.mrb[0].mxu0
        %440 = vmatprep.mubr.f32.mxu0 0.0
        %441 = vmatmul.mubr.f32.gmra.mrb[0].mxu0 %v345
        %v442 = vpop.f32.mrb[0].mxu0
        %v443 = vadd.f32 %v329, %v442
        %v444 = vpop.f32.mrb[0].mxu0
        %445 = vmatprep.mubr.f32.mxu0 0.0
        %446 = vmatmul.mubr.f32.gmra.mrb[0].mxu0 %v348
        %v447 = vpop.f32.mrb[0].mxu0
        %v448 = vadd.f32 %v329, %v447
        %v449 = vpop.f32.mrb[0].mxu0
        %450 = vmatprep.mubr.f32.mxu0 0.0
        %451 = vmatmul.mubr.f32.gmra.mrb[0].mxu0 %v351
        %v452 = vpop.f32.mrb[0].mxu0
        %v453 = vadd.f32 %v329, %v452
        %v454 = vpop.f32.mrb[0].mxu0
        %455 = vmatprep.mubr.f32.mxu0 0.0
        %456 = vmatmul.mubr.f32.gmra.mrb[0].mxu0 %v354
        %v457 = vpop.f32.mrb[0].mxu0
        %v458 = vadd.f32 %v329, %v457
        %v459 = vpop.f32.mrb[0].mxu0
        %460 = vdwg.mxu0
        %v461 = vtanh.pop %v423
        %v462 = vtanh.pop %v428
        %v463 = vtanh.pop %v433
        %v464 = vtanh.pop %v438
        %v465 = vtanh.pop %v443
        %v466 = vtanh.pop %v448
        %v467 = vtanh.pop %v453
        %v468 = vtanh.pop %v458
        %v469 = vxor.u32 %v423, 2147483648
        %v470 = vxor.u32 %v428, 2147483648
        %v471 = vxor.u32 %v433, 2147483648
        %v472 = vxor.u32 %v438, 2147483648
        %v473 = vxor.u32 %v443, 2147483648
        %v474 = vxor.u32 %v448, 2147483648
        %v475 = vxor.u32 %v453, 2147483648
        %v476 = vxor.u32 %v458, 2147483648
        %v477 = vmul.f32 %v469, 1.442695
        %v478 = vpow.pop %v477
        %v479 = vmul.f32 %v470, 1.442695
        %v480 = vpow.pop %v479
        %v481 = vmul.f32 %v471, 1.442695
        %v482 = vpow.pop %v481
        %v483 = vmul.f32 %v472, 1.442695
        %v484 = vpow.pop %v483
        %v485 = vmul.f32 %v473, 1.442695
        %v486 = vpow.pop %v485
        %v487 = vmul.f32 %v474, 1.442695
        %v488 = vpow.pop %v487
        %v489 = vmul.f32 %v475, 1.442695
        %v490 = vpow.pop %v489
        %v491 = vmul.f32 %v476, 1.442695
        %v492 = vpow.pop %v491
        %v493 = vadd.f32 %v478, 1.0
        %v494 = vadd.f32 %v480, 1.0
        %v495 = vadd.f32 %v482, 1.0
        %v496 = vadd.f32 %v484, 1.0
        %v497 = vadd.f32 %v486, 1.0
        %v498 = vadd.f32 %v488, 1.0
        %v499 = vadd.f32 %v490, 1.0
        %v500 = vadd.f32 %v492, 1.0
        %v501 = vrcp.pop %v493
        %v502 = vmul.f32 1.0, %v501
        %v503 = vrcp.pop %v494
        %v504 = vmul.f32 1.0, %v503
        %v505 = vrcp.pop %v495
        %v506 = vmul.f32 1.0, %v505
        %v507 = vrcp.pop %v496
        %v508 = vmul.f32 1.0, %v507
        %v509 = vrcp.pop %v497
        %v510 = vmul.f32 1.0, %v509
        %v511 = vrcp.pop %v498
        %v512 = vmul.f32 1.0, %v511
        %v513 = vrcp.pop %v499
        %v514 = vmul.f32 1.0, %v513
        %v515 = vrcp.pop %v500
        %v516 = vmul.f32 1.0, %v515
        %525 = vrot.lane.b32.xlu0 %v502, 96
        %v526 = vpop.permute.xlu0 %525
        %527 = vrot.lane.b32.xlu0 %v504, 96
        %v528 = vpop.permute.xlu0 %527
        %529 = vrot.lane.b32.xlu0 %v506, 96
        %v530 = vpop.permute.xlu0 %529
        %531 = vrot.lane.b32.xlu0 %v508, 96
        %v532 = vpop.permute.xlu0 %531
        %533 = vrot.lane.b32.xlu0 %v510, 96
        %v534 = vpop.permute.xlu0 %533
        %535 = vrot.lane.b32.xlu0 %v512, 96
        %v536 = vpop.permute.xlu0 %535
        %537 = vrot.lane.b32.xlu0 %v514, 96
        %v538 = vpop.permute.xlu0 %537
        %539 = vrot.lane.b32.xlu0 %v516, 96
        %v540 = vpop.permute.xlu0 %539
        %v549 = vmul.f32 %v312, %v526
        %v550 = vmul.f32 %v313, %v528
        %v551 = vmul.f32 %v314, %v530
        %v552 = vmul.f32 %v315, %v532
        %v553 = vmul.f32 %v316, %v534
        %v554 = vmul.f32 %v317, %v536
        %v555 = vmul.f32 %v318, %v538
        %v556 = vmul.f32 %v319, %v540
        %558 = vset.pattern.permute.xlu0 0
        %559 = vperm.xlu0 %558, %v549
        %v560 = vpop.permute.xlu0 %559
        %563 = vset.pattern.permute.xlu0 0
        %564 = vperm.xlu0 %563, %v550
        %v565 = vpop.permute.xlu0 %564
        %568 = vset.pattern.permute.xlu0 0
        %569 = vperm.xlu0 %568, %v551
        %v570 = vpop.permute.xlu0 %569
        %573 = vset.pattern.permute.xlu0 0
        %574 = vperm.xlu0 %573, %v552
        %v575 = vpop.permute.xlu0 %574
        %578 = vset.pattern.permute.xlu0 0
        %579 = vperm.xlu0 %578, %v553
        %v580 = vpop.permute.xlu0 %579
        %583 = vset.pattern.permute.xlu0 0
        %584 = vperm.xlu0 %583, %v554
        %v585 = vpop.permute.xlu0 %584
        %588 = vset.pattern.permute.xlu0 0
        %589 = vperm.xlu0 %588, %v555
        %v590 = vpop.permute.xlu0 %589
        %593 = vset.pattern.permute.xlu0 0
        %594 = vperm.xlu0 %593, %v556
        %v595 = vpop.permute.xlu0 %594
        %v597 = vmul.f32 %v560, %v461
        %v598 = vmul.f32 %v565, %v462
        %v599 = vmul.f32 %v570, %v463
        %v600 = vmul.f32 %v575, %v464
        %v601 = vmul.f32 %v580, %v465
        %v602 = vmul.f32 %v585, %v466
        %v603 = vmul.f32 %v590, %v467
        %v604 = vmul.f32 %v595, %v468
        %v605 = vsub.f32 %v312, 1.0
        %v606 = vsub.f32 %v313, 1.0
        %v607 = vsub.f32 %v314, 1.0
        %v608 = vsub.f32 %v315, 1.0
        %v609 = vsub.f32 %v316, 1.0
        %v610 = vsub.f32 %v317, 1.0
        %v611 = vsub.f32 %v318, 1.0
        %v612 = vsub.f32 %v319, 1.0
        %v613 = vmul.f32 %v605, 1e+09
        %v614 = vmul.f32 %v606, 1e+09
        %v615 = vmul.f32 %v607, 1e+09
        %v616 = vmul.f32 %v608, 1e+09
        %v617 = vmul.f32 %v609, 1e+09
        %v618 = vmul.f32 %v610, 1e+09
        %v619 = vmul.f32 %v611, 1e+09
        %v620 = vmul.f32 %v612, 1e+09
        %622 = vset.pattern.permute.xlu0 0
        %623 = vperm.xlu0 %622, %v613
        %v624 = vpop.permute.xlu0 %623
        %627 = vset.pattern.permute.xlu0 0
        %628 = vperm.xlu0 %627, %v614
        %v629 = vpop.permute.xlu0 %628
        %632 = vset.pattern.permute.xlu0 0
        %633 = vperm.xlu0 %632, %v615
        %v634 = vpop.permute.xlu0 %633
        %637 = vset.pattern.permute.xlu0 0
        %638 = vperm.xlu0 %637, %v616
        %v639 = vpop.permute.xlu0 %638
        %642 = vset.pattern.permute.xlu0 0
        %643 = vperm.xlu0 %642, %v617
        %v644 = vpop.permute.xlu0 %643
        %647 = vset.pattern.permute.xlu0 0
        %648 = vperm.xlu0 %647, %v618
        %v649 = vpop.permute.xlu0 %648
        %652 = vset.pattern.permute.xlu0 0
        %653 = vperm.xlu0 %652, %v619
        %v654 = vpop.permute.xlu0 %653
        %657 = vset.pattern.permute.xlu0 0
        %658 = vperm.xlu0 %657, %v620
        %v659 = vpop.permute.xlu0 %658
        %v661 = vadd.f32 %v597, %v624
        %v662 = vadd.f32 %v598, %v629
        %v663 = vadd.f32 %v599, %v634
        %v664 = vadd.f32 %v600, %v639
        %v665 = vadd.f32 %v601, %v644
        %v666 = vadd.f32 %v602, %v649
        %v667 = vadd.f32 %v603, %v654
        %v668 = vadd.f32 %v604, %v659
        %v669 = vsel %vm331, %v661, -inf
        %v670 = vrot.slane %v669, 4
        %v671 = vmax.f32 %v669, %v670
        %v672 = vrot.slane %v671, 2
        %v673 = vmax.f32 %v671, %v672
        %v674 = vrot.slane %v673, 1
        %v675 = vmax.f32 %v673, %v674
        %v676 = vsel %vm331, %v662, -inf
        %v677 = vrot.slane %v676, 4
        %v678 = vmax.f32 %v676, %v677
        %v679 = vrot.slane %v678, 2
        %v680 = vmax.f32 %v678, %v679
        %v681 = vrot.slane %v680, 1
        %v682 = vmax.f32 %v680, %v681
        %v683 = vsel %vm331, %v663, -inf
        %v684 = vrot.slane %v683, 4
        %v685 = vmax.f32 %v683, %v684
        %v686 = vrot.slane %v685, 2
        %v687 = vmax.f32 %v685, %v686
        %v688 = vrot.slane %v687, 1
        %v689 = vmax.f32 %v687, %v688
        %v690 = vsel %vm331, %v664, -inf
        %v691 = vrot.slane %v690, 4
        %v692 = vmax.f32 %v690, %v691
        %v693 = vrot.slane %v692, 2
        %v694 = vmax.f32 %v692, %v693
        %v695 = vrot.slane %v694, 1
        %v696 = vmax.f32 %v694, %v695
        %v697 = vsel %vm331, %v665, -inf
        %v698 = vrot.slane %v697, 4
        %v699 = vmax.f32 %v697, %v698
        %v700 = vrot.slane %v699, 2
        %v701 = vmax.f32 %v699, %v700
        %v702 = vrot.slane %v701, 1
        %v703 = vmax.f32 %v701, %v702
        %v704 = vsel %vm331, %v666, -inf
        %v705 = vrot.slane %v704, 4
        %v706 = vmax.f32 %v704, %v705
        %v707 = vrot.slane %v706, 2
        %v708 = vmax.f32 %v706, %v707
        %v709 = vrot.slane %v708, 1
        %v710 = vmax.f32 %v708, %v709
        %v711 = vsel %vm331, %v667, -inf
        %v712 = vrot.slane %v711, 4
        %v713 = vmax.f32 %v711, %v712
        %v714 = vrot.slane %v713, 2
        %v715 = vmax.f32 %v713, %v714
        %v716 = vrot.slane %v715, 1
        %v717 = vmax.f32 %v715, %v716
        %v718 = vsel %vm331, %v668, -inf
        %v719 = vrot.slane %v718, 4
        %v720 = vmax.f32 %v718, %v719
        %v721 = vrot.slane %v720, 2
        %v722 = vmax.f32 %v720, %v721
        %v723 = vrot.slane %v722, 1
        %v724 = vmax.f32 %v722, %v723
        %vm725 = vcmask 7168
        %v726 = vsel %vm725, %v312, 0.0
        %v727 = vrot.slane %v726, 4
        %v728 = vadd.f32 %v726, %v727
        %v729 = vrot.slane %v728, 2
        %v730 = vadd.f32 %v728, %v729
        %v731 = vrot.slane %v730, 1
        %v732 = vadd.f32 %v730, %v731
        %v733 = vsel %vm725, %v313, 0.0
        %v734 = vrot.slane %v733, 4
        %v735 = vadd.f32 %v733, %v734
        %v736 = vrot.slane %v735, 2
        %v737 = vadd.f32 %v735, %v736
        %v738 = vrot.slane %v737, 1
        %v739 = vadd.f32 %v737, %v738
        %v740 = vsel %vm725, %v314, 0.0
        %v741 = vrot.slane %v740, 4
        %v742 = vadd.f32 %v740, %v741
        %v743 = vrot.slane %v742, 2
        %v744 = vadd.f32 %v742, %v743
        %v745 = vrot.slane %v744, 1
        %v746 = vadd.f32 %v744, %v745
        %v747 = vsel %vm725, %v315, 0.0
        %v748 = vrot.slane %v747, 4
        %v749 = vadd.f32 %v747, %v748
        %v750 = vrot.slane %v749, 2
        %v751 = vadd.f32 %v749, %v750
        %v752 = vrot.slane %v751, 1
        %v753 = vadd.f32 %v751, %v752
        %v754 = vsel %vm725, %v316, 0.0
        %v755 = vrot.slane %v754, 4
        %v756 = vadd.f32 %v754, %v755
        %v757 = vrot.slane %v756, 2
        %v758 = vadd.f32 %v756, %v757
        %v759 = vrot.slane %v758, 1
        %v760 = vadd.f32 %v758, %v759
        %v761 = vsel %vm725, %v317, 0.0
        %v762 = vrot.slane %v761, 4
        %v763 = vadd.f32 %v761, %v762
        %v764 = vrot.slane %v763, 2
        %v765 = vadd.f32 %v763, %v764
        %v766 = vrot.slane %v765, 1
        %v767 = vadd.f32 %v765, %v766
        %v768 = vsel %vm725, %v318, 0.0
        %v769 = vrot.slane %v768, 4
        %v770 = vadd.f32 %v768, %v769
        %v771 = vrot.slane %v770, 2
        %v772 = vadd.f32 %v770, %v771
        %v773 = vrot.slane %v772, 1
        %v774 = vadd.f32 %v772, %v773
        %v775 = vsel %vm725, %v319, 0.0
        %v776 = vrot.slane %v775, 4
        %v777 = vadd.f32 %v775, %v776
        %v778 = vrot.slane %v777, 2
        %v779 = vadd.f32 %v777, %v778
        %v780 = vrot.slane %v779, 1
        %v781 = vadd.f32 %v779, %v780
        %v782 = vsel %vm331, %v597, 0.0
        %v783 = vrot.slane %v782, 4
        %v784 = vadd.f32 %v782, %v783
        %v785 = vrot.slane %v784, 2
        %v786 = vadd.f32 %v784, %v785
        %v787 = vrot.slane %v786, 1
        %v788 = vadd.f32 %v786, %v787
        %v789 = vsel %vm331, %v598, 0.0
        %v790 = vrot.slane %v789, 4
        %v791 = vadd.f32 %v789, %v790
        %v792 = vrot.slane %v791, 2
        %v793 = vadd.f32 %v791, %v792
        %v794 = vrot.slane %v793, 1
        %v795 = vadd.f32 %v793, %v794
        %v796 = vsel %vm331, %v599, 0.0
        %v797 = vrot.slane %v796, 4
        %v798 = vadd.f32 %v796, %v797
        %v799 = vrot.slane %v798, 2
        %v800 = vadd.f32 %v798, %v799
        %v801 = vrot.slane %v800, 1
        %v802 = vadd.f32 %v800, %v801
        %v803 = vsel %vm331, %v600, 0.0
        %v804 = vrot.slane %v803, 4
        %v805 = vadd.f32 %v803, %v804
        %v806 = vrot.slane %v805, 2
        %v807 = vadd.f32 %v805, %v806
        %v808 = vrot.slane %v807, 1
        %v809 = vadd.f32 %v807, %v808
        %v810 = vsel %vm331, %v601, 0.0
        %v811 = vrot.slane %v810, 4
        %v812 = vadd.f32 %v810, %v811
        %v813 = vrot.slane %v812, 2
        %v814 = vadd.f32 %v812, %v813
        %v815 = vrot.slane %v814, 1
        %v816 = vadd.f32 %v814, %v815
        %v817 = vsel %vm331, %v602, 0.0
        %v818 = vrot.slane %v817, 4
        %v819 = vadd.f32 %v817, %v818
        %v820 = vrot.slane %v819, 2
        %v821 = vadd.f32 %v819, %v820
        %v822 = vrot.slane %v821, 1
        %v823 = vadd.f32 %v821, %v822
        %v824 = vsel %vm331, %v603, 0.0
        %v825 = vrot.slane %v824, 4
        %v826 = vadd.f32 %v824, %v825
        %v827 = vrot.slane %v826, 2
        %v828 = vadd.f32 %v826, %v827
        %v829 = vrot.slane %v828, 1
        %v830 = vadd.f32 %v828, %v829
        %v831 = vsel %vm331, %v604, 0.0
        %v832 = vrot.slane %v831, 4
        %v833 = vadd.f32 %v831, %v832
        %v834 = vrot.slane %v833, 2
        %v835 = vadd.f32 %v833, %v834
        %v836 = vrot.slane %v835, 1
        %v837 = vadd.f32 %v835, %v836
        %839 = vset.pattern.permute.xlu0 0
        %840 = vperm.xlu0 %839, %v732
        %v841 = vpop.permute.xlu0 %840
        %844 = vset.pattern.permute.xlu0 0
        %845 = vperm.xlu0 %844, %v739
        %v846 = vpop.permute.xlu0 %845
        %849 = vset.pattern.permute.xlu0 0
        %850 = vperm.xlu0 %849, %v746
        %v851 = vpop.permute.xlu0 %850
        %854 = vset.pattern.permute.xlu0 0
        %855 = vperm.xlu0 %854, %v753
        %v856 = vpop.permute.xlu0 %855
        %859 = vset.pattern.permute.xlu0 0
        %860 = vperm.xlu0 %859, %v760
        %v861 = vpop.permute.xlu0 %860
        %864 = vset.pattern.permute.xlu0 0
        %865 = vperm.xlu0 %864, %v767
        %v866 = vpop.permute.xlu0 %865
        %869 = vset.pattern.permute.xlu0 0
        %870 = vperm.xlu0 %869, %v774
        %v871 = vpop.permute.xlu0 %870
        %874 = vset.pattern.permute.xlu0 0
        %875 = vperm.xlu0 %874, %v781
        %v876 = vpop.permute.xlu0 %875
        %v878 = vrcp.pop %v841
        %v879 = vmul.f32 %v788, %v878
        %v880 = vrcp.pop %v846
        %v881 = vmul.f32 %v795, %v880
        %v882 = vrcp.pop %v851
        %v883 = vmul.f32 %v802, %v882
        %v884 = vrcp.pop %v856
        %v885 = vmul.f32 %v809, %v884
        %v886 = vrcp.pop %v861
        %v887 = vmul.f32 %v816, %v886
        %v888 = vrcp.pop %v866
        %v889 = vmul.f32 %v823, %v888
        %v890 = vrcp.pop %v871
        %v891 = vmul.f32 %v830, %v890
        %v892 = vrcp.pop %v876
        %v893 = vmul.f32 %v837, %v892
        %v894 = vadd.f32 %v879, %v675
        %v895 = vadd.f32 %v881, %v682
        %v896 = vadd.f32 %v883, %v689
        %v897 = vadd.f32 %v885, %v696
        %v898 = vadd.f32 %v887, %v703
        %v899 = vadd.f32 %v889, %v710
        %v900 = vadd.f32 %v891, %v717
        %v901 = vadd.f32 %v893, %v724
        %v902 = vld [vmem:[#allocation5] sm:$0xff]
        %v903 = vld [vmem:[#allocation5 + $0x8] sm:$0xff]
        %v904 = vld [vmem:[#allocation5 + $0x10] sm:$0xff]
        %v905 = vld [vmem:[#allocation5 + $0x18] sm:$0xff]
        %v906 = vld [vmem:[%s5] sm:$0x1]
        %v908 = vlaneseq
        %v909 = vshrl.u32 %v908, 7
        %v910 = vsub.s32 0, %v909
        %v911 = vrot.slane %v906, %v910
        %vm921 = vcmask 1041409
        %v922 = vsel %vm921, %v895, %v894
        %vm923 = vcmask 1042434
        %v924 = vsel %vm923, %v896, %v922
        %vm925 = vcmask 1043459
        %v926 = vsel %vm925, %v897, %v924
        %vm927 = vcmask 1044484
        %v928 = vsel %vm927, %v898, %v926
        %vm929 = vcmask 1045509
        %v930 = vsel %vm929, %v899, %v928
        %vm931 = vcmask 1046534
        %v932 = vsel %vm931, %v900, %v930
        %vm933 = vcmask 1047559
        %v934 = vsel %vm933, %v901, %v932
        %v935 = vsel %vm331, %v934, 0
        %937 = vmatprep.subr.mxu0 0.0
        %938 = vmatpush1.msra.mxu0 %v902
        %939 = vmatprep.subr.mxu0 0.0
        %940 = vmatpush1.msra.mxu0 %v903
        %941 = vmatprep.subr.mxu0 0.0
        %942 = vmatpush1.msra.mxu0 %v904
        %943 = vmatprep.subr.mxu0 0.0
        %944 = vmatpush1.msra.mxu0 %v905
        %945 = vmatprep.subr.mxu0 0.0
        %946 = vmatpush1.msra.mxu0 0.0
        %947 = vmatprep.subr.mxu0 0.0
        %948 = vmatpush1.msra.mxu0 0.0
        %949 = vmatprep.subr.mxu0 0.0
        %950 = vmatpush1.msra.mxu0 0.0
        %951 = vmatprep.subr.mxu0 0.0
        %952 = vmatpush1.msra.mxu0 0.0
        %953 = vmatprep.subr.mxu0 0.0
        %954 = vmatpush1.msra.mxu0 0.0
        %955 = vmatprep.subr.mxu0 0.0
        %956 = vmatpush1.msra.mxu0 0.0
        %957 = vmatprep.subr.mxu0 0.0
        %958 = vmatpush1.msra.mxu0 0.0
        %959 = vmatprep.subr.mxu0 0.0
        %960 = vmatpush1.msra.mxu0 0.0
        %961 = vmatprep.subr.mxu0 0.0
        %962 = vmatpush1.msra.mxu0 0.0
        %963 = vmatprep.subr.mxu0 0.0
        %964 = vmatpush1.msra.mxu0 0.0
        %965 = vmatprep.subr.mxu0 0.0
        %966 = vmatpush1.msra.mxu0 0.0
        %967 = vmatprep.subr.mxu0 0.0
        %968 = vmatpush1.msra.mxu0 0.0
        %969 = vmatprep.subr.mxu0 0.0
        %970 = vmatpush1.msra.mxu0 0.0
        %971 = vmatprep.subr.mxu0 0.0
        %972 = vmatpush1.msra.mxu0 0.0
        %973 = vmatprep.subr.mxu0 0.0
        %974 = vmatpush1.msra.mxu0 0.0
        %975 = vmatprep.subr.mxu0 0.0
        %976 = vmatpush1.msra.mxu0 0.0
        %977 = vmatprep.subr.mxu0 0.0
        %978 = vmatpush1.msra.mxu0 0.0
        %979 = vmatprep.subr.mxu0 0.0
        %980 = vmatpush1.msra.mxu0 0.0
        %981 = vmatprep.subr.mxu0 0.0
        %982 = vmatpush1.msra.mxu0 0.0
        %983 = vmatprep.subr.mxu0 0.0
        %984 = vmatpush1.msra.mxu0 0.0
        %985 = vmatprep.subr.mxu0 0.0
        %986 = vmatpush1.msra.mxu0 0.0
        %987 = vmatprep.subr.mxu0 0.0
        %988 = vmatpush1.msra.mxu0 0.0
        %989 = vmatprep.subr.mxu0 0.0
        %990 = vmatpush1.msra.mxu0 0.0
        %991 = vmatprep.subr.mxu0 0.0
        %992 = vmatpush1.msra.mxu0 0.0
        %993 = vmatprep.subr.mxu0 0.0
        %994 = vmatpush1.msra.mxu0 0.0
        %995 = vmatprep.subr.mxu0 0.0
        %996 = vmatpush1.msra.mxu0 0.0
        %997 = vmatprep.subr.mxu0 0.0
        %998 = vmatpush1.msra.mxu0 0.0
        %999 = vmatprep.subr.mxu0 0.0
        %1000 = vmatpush1.msra.mxu0 0.0
        %1001 = vmatprep.mubr.f32.mxu0 0.0
        %1002 = vmatmul.mubr.f32.gmra.mrb[0].mxu0 %v935
        %v1003 = vpop.f32.mrb[0].mxu0
        %v1004 = vadd.f32 %v911, %v1003
        %v1005 = vpop.f32.mrb[0].mxu0
        %1006 = vdwg.mxu0
        %1007 = vst [vmem:[%s291] sm:$0xff] %v1004
        %s1008 = sand.u32 %s166, 1
        %s1009 = scalar_lea.sflag [#allocation4], %s1008
        %s1010 = sand.u32 %s166, 1
        %s1011 = smul.addr %s1010, 8
        %s1012 = scalar_lea.vmem [#allocation7], %s1011
        // Predicated region
        $region53: #{tpu_custom_call.1} parent=43 // pred_check
          %p1013 = pneg %p176
        $region54: #{tpu_custom_call.1} parent=43 // pred_check_branch
          %1015 = sbr.rel (%p1013) target = $region56
        $region55: #{tpu_custom_call.1} parent=43 // pred_region
          %s1017 = ssub.s32 128, 128
          %1018 = vsyncadd %s1009, %s1017
          %s1019 = smul.addr %s22, 128
          %s1020 = scalar_lea.hbm %s6, %s1019
          %s1022 = sshll.u32 %s1012, 4
          %s1023 = int_to_ptr.vmem [resolvable:$true] %s1022
          %1025 = dma.vmem_to_hbm [thread:$0]  %s1023, 128, %s1020, %s1009
        $region56: #{tpu_custom_call.1} parent=43 // pred_fallthru
          _
      $region44: #{tpu_custom_call.1} parent=5 // pred_fallthru
        _
      %p1026 = scmp.le.s32.totalorder 2, %s17
      // Predicated region
      $region57: #{tpu_custom_call.1} parent=5 // pred_check
        %p1027 = pneg %p1026
      $region58: #{tpu_custom_call.1} parent=5 // pred_check_branch
        %1029 = sbr.rel (%p1027) target = $region60
      $region59: #{tpu_custom_call.1} parent=5 // pred_region
        %s1030 = ssub.s32 %s17, 2
        // Predicated region
        $region61: #{tpu_custom_call.1} parent=59 // pred_check
          %p1031 = pneg %p182
        $region62: #{tpu_custom_call.1} parent=59 // pred_check_branch
          %1033 = sbr.rel (%p1031) target = $region64
        $region63: #{tpu_custom_call.1} parent=59 // pred_region
          %s1034 = sand.u32 %s167, 1
          %s1035 = scalar_lea.sflag [#allocation4], %s1034
          %s1036 = sand.u32 %s167, 1
          %s1037 = smul.addr %s1036, 8
          %s1038 = scalar_lea.vmem [#allocation7], %s1037
          %1039 = dma.done %s1035, 128
        $region64: #{tpu_custom_call.1} parent=59 // pred_fallthru
          _
      $region60: #{tpu_custom_call.1} parent=5 // pred_fallthru
        _
    $region6: #{tpu_custom_call.1} parent=1 // loop_footer
      %s21 = sadd.s32 1, %s17
    $region7: #{tpu_custom_call.1} parent=1 // loop_footer_branch
      %16 = sbr.rel target = $region3
    $region8: #{tpu_custom_call.1} parent=1 // loop_exit
      _
    %1040 = vsyncpa [#allocation3], 1
    %s1041 = scalar_lea.sflag [#allocation3], 1
    %1042 = vsyncpa %s1041, 1
    %1043 = vsyncpa [#allocation6], 1
    %1044 = vsyncpa [#allocation4], 1
    %s1045 = scalar_lea.sflag [#allocation4], 1
    %1046 = vsyncpa %s1045, 1

</llo_original>
